<compile_context>
chip_gen: v7x
topology: tpu7x:2x2x1
jax: 0.10.0
libtpu: 0.0.40
codegen_flags: <defaults>
</compile_context>

<pallas_src>
import functools

import jax
import jax.numpy as jnp
from jax.experimental import pallas as pl
from jax.experimental.pallas import tpu as pltpu

_LANE = 128


def _round_up(x, m):
    return ((x + m - 1) // m) * m


def _pad2(a, rows, cols):
    return jnp.pad(a, ((0, rows - a.shape[0]), (0, cols - a.shape[1])))


def _mlp_kernel(x_ref,
                w0_ref, b0_ref,
                w1_ref, b1_ref,
                w2_ref, b2_ref,
                w3_ref, b3_ref,
                o_ref):
    """Whole MLP forward in one kernel: 3 x (Linear+Sigmoid) + final Linear.

    Straight-line body (no Python loop) so broadcast_in_dim for each bias is
    emitted exactly once.
    """
    h = x_ref[...]

    # Layer 0: Linear(input -> hidden) + Sigmoid
    h = jnp.dot(h, w0_ref[...], preferred_element_type=jnp.float32) + b0_ref[...]
    h = jax.nn.sigmoid(h)

    # Layer 1: Linear(hidden -> hidden) + Sigmoid
    h = jnp.dot(h, w1_ref[...], preferred_element_type=jnp.float32) + b1_ref[...]
    h = jax.nn.sigmoid(h)

    # Layer 2: Linear(hidden -> hidden) + Sigmoid
    h = jnp.dot(h, w2_ref[...], preferred_element_type=jnp.float32) + b2_ref[...]
    h = jax.nn.sigmoid(h)

    # Output layer: Linear(hidden -> output), no activation
    h = jnp.dot(h, w3_ref[...], preferred_element_type=jnp.float32) + b3_ref[...]

    o_ref[...] = h.astype(o_ref.dtype)


@jax.jit
def neural_net_forward(x, params):
    """params: list of (W, b) tuples with W shaped (in_features, out_features)."""
    batch, in_features = x.shape
    out_features = params[-1][0].shape[1]

    # ---- pad all feature dims to lane width (exact math, see header note) ----
    in_pad = _round_up(max(in_features, _LANE), _LANE)
    padded_params = []
    for w, b in params:
        fan_in, fan_out = w.shape
        fi_pad = _round_up(max(fan_in, _LANE), _LANE)
        fo_pad = _round_up(max(fan_out, _LANE), _LANE)
        w_p = _pad2(w, fi_pad, fo_pad)
        b_p = jnp.pad(b, (0, fo_pad - fan_out)).reshape(1, fo_pad)
        padded_params.append((w_p, b_p))
    out_pad = padded_params[-1][0].shape[1]

    # ---- batch tiling: grid over batch, weights resident across iterations ----
    # Tile sized well under VMEM even on v7x (64 MiB): with 512-row tiles and
    # 128-wide features, x/out tiles are 256 KiB each (x2 for double-buffering)
    # plus four 128x128 f32 weights = << 32 MiB scoped default.
    tb = min(512, _round_up(batch, 8))
    padded_batch = _round_up(batch, tb)
    grid = (padded_batch // tb,)

    x_p = jnp.pad(x, ((0, padded_batch - batch), (0, in_pad - in_features)))

    flat_args = [x_p]
    in_specs = [pl.BlockSpec((tb, in_pad), lambda i: (i, 0))]
    for w_p, b_p in padded_params:
        flat_args.append(w_p)
        flat_args.append(b_p)
        # Weights / biases: same block every iteration -> stay resident in VMEM.
        in_specs.append(pl.BlockSpec(w_p.shape, lambda i: (0, 0)))
        in_specs.append(pl.BlockSpec(b_p.shape, lambda i: (0, 0)))

    # ---- advisory cost estimate (unpadded logical work) ----
    hidden = params[0][0].shape[1]
    n_layers = len(params)
    flops = 2 * batch * (
        in_features * hidden
        + hidden * hidden * (n_layers - 2)
        + hidden * out_features
    )
    transcendentals = batch * hidden * (n_layers - 1)          # sigmoids
    bytes_accessed = 4 * (
        padded_batch * (in_pad + out_pad)
        + sum(w.size + b.size for w, b in padded_params)
    )
    cost = pl.CostEstimate(flops=int(flops),
                           transcendentals=int(transcendentals),
                           bytes_accessed=int(bytes_accessed))

    out = pl.pallas_call(
        _mlp_kernel,
        out_shape=jax.ShapeDtypeStruct((padded_batch, out_pad), jnp.float32),
        grid=grid,
        in_specs=in_specs,
        out_specs=pl.BlockSpec((tb, out_pad), lambda i: (i, 0)),
        compiler_params=pltpu.CompilerParams(
            dimension_semantics=("parallel",)),   # megacore sharding on v7x
        cost_estimate=cost,
    )(*flat_args)

    # Strip batch + lane padding.
    return out[:batch, :out_features]


def init_params(key, input_size, hidden_size=8, num_hidden_layers=3, output_size=2):
    """Deterministic init mimicking PyTorch nn.Linear (uniform +/- 1/sqrt(fan_in)).
    Weights are stored as (in_features, out_features)."""
    dims = [input_size] + [hidden_size] * num_hidden_layers + [output_size]
    params = []
    for i in range(len(dims) - 1):
        fan_in, fan_out = dims[i], dims[i + 1]
        key, kw, kb = jax.random.split(key, 3)
        bound = 1.0 / jnp.sqrt(fan_in)
        w = jax.random.uniform(kw, (fan_in, fan_out), jnp.float32, -bound, bound)
        b = jax.random.uniform(kb, (fan_out,), jnp.float32, -bound, bound)
        params.append((w, b))
    return params


def reference_forward(x, params):
    h = x
    for i, (w, b) in enumerate(params):
        h = h @ w + b
        if i < len(params) - 1:
            h = jax.nn.sigmoid(h)
    return h


if __name__ == "__main__":
    key = jax.random.PRNGKey(0)
    key, kx = jax.random.split(key)

    batch, input_size = 8, 16
    x = jax.random.normal(kx, (batch, input_size), jnp.float32)

    params = init_params(key, input_size, hidden_size=8,
                         num_hidden_layers=3, output_size=2)

    out = neural_net_forward(x, params)
    out = jax.block_until_ready(out)

    ref = reference_forward(x, params)
    assert out.shape == (batch, 2), out.shape
    assert jnp.allclose(out, ref, atol=1e-5, rtol=1e-5), \
        f"max err {jnp.max(jnp.abs(out - ref))}"

    print("KERNEL_OK")
</pallas_src>

<mosaic_0001>
module attributes {stable_mosaic.version = 11 : i64} {
  func.func @_mlp_kernel(%arg0: i32, %arg1: memref<8x128xf32, #tpu.memory_space<vmem>>, %arg2: memref<128x128xf32, #tpu.memory_space<vmem>>, %arg3: memref<1x128xf32, #tpu.memory_space<vmem>>, %arg4: memref<128x128xf32, #tpu.memory_space<vmem>>, %arg5: memref<1x128xf32, #tpu.memory_space<vmem>>, %arg6: memref<128x128xf32, #tpu.memory_space<vmem>>, %arg7: memref<1x128xf32, #tpu.memory_space<vmem>>, %arg8: memref<128x128xf32, #tpu.memory_space<vmem>>, %arg9: memref<1x128xf32, #tpu.memory_space<vmem>>, %arg10: memref<8x128xf32, #tpu.memory_space<vmem>>) attributes {dimension_semantics = [#tpu.dimension_semantics<parallel>], iteration_bounds = array<i64: 1>, scalar_prefetch = 0 : i64, scratch_operands = 0 : i64, tpu.core_type = #tpu.core_type<tc>, window_params = [{transform_indices = @transform_0, window_bounds = array<i64: 8, 128>}, {pipeline_mode = #tpu.pipeline_mode<synchronous>, transform_indices = @transform_1, window_bounds = array<i64: 128, 128>}, {pipeline_mode = #tpu.pipeline_mode<synchronous>, transform_indices = @transform_2, window_bounds = array<i64: 1, 128>}, {pipeline_mode = #tpu.pipeline_mode<synchronous>, transform_indices = @transform_3, window_bounds = array<i64: 128, 128>}, {pipeline_mode = #tpu.pipeline_mode<synchronous>, transform_indices = @transform_4, window_bounds = array<i64: 1, 128>}, {pipeline_mode = #tpu.pipeline_mode<synchronous>, transform_indices = @transform_5, window_bounds = array<i64: 128, 128>}, {pipeline_mode = #tpu.pipeline_mode<synchronous>, transform_indices = @transform_6, window_bounds = array<i64: 1, 128>}, {pipeline_mode = #tpu.pipeline_mode<synchronous>, transform_indices = @transform_7, window_bounds = array<i64: 128, 128>}, {pipeline_mode = #tpu.pipeline_mode<synchronous>, transform_indices = @transform_8, window_bounds = array<i64: 1, 128>}, {transform_indices = @transform_9, window_bounds = array<i64: 8, 128>}]} {
    %c0 = arith.constant 0 : index
    %c0_0 = arith.constant 0 : index
    %0 = vector.load %arg1[%c0, %c0_0] : memref<8x128xf32, #tpu.memory_space<vmem>>, vector<8x128xf32>
    %c0_1 = arith.constant 0 : index
    %c0_2 = arith.constant 0 : index
    %1 = vector.load %arg2[%c0_1, %c0_2] : memref<128x128xf32, #tpu.memory_space<vmem>>, vector<128x128xf32>
    %cst = arith.constant dense<0.000000e+00> : vector<8x128xf32>
    %2 = tpu.matmul %0, %1, %cst {dimension_numbers = #tpu.dot_dimension_numbers<[1], [0], [0], [1], [0, 0, 1, 1], [], []>} : vector<8x128xf32>, vector<128x128xf32>, vector<8x128xf32> -> vector<8x128xf32>
    %c0_3 = arith.constant 0 : index
    %c0_4 = arith.constant 0 : index
    %3 = vector.load %arg3[%c0_3, %c0_4] : memref<1x128xf32, #tpu.memory_space<vmem>>, vector<1x128xf32>
    %4 = vector.broadcast %3 : vector<1x128xf32> to vector<8x128xf32>
    %5 = arith.addf %2, %4 : vector<8x128xf32>
    %6 = arith.negf %5 : vector<8x128xf32>
    %7 = math.exp %6 : vector<8x128xf32>
    %cst_5 = arith.constant 1.000000e+00 : f32
    %8 = vector.broadcast %cst_5 : f32 to vector<8x128xf32>
    %9 = arith.addf %8, %7 : vector<8x128xf32>
    %10 = arith.divf %8, %9 : vector<8x128xf32>
    %c0_6 = arith.constant 0 : index
    %c0_7 = arith.constant 0 : index
    %11 = vector.load %arg4[%c0_6, %c0_7] : memref<128x128xf32, #tpu.memory_space<vmem>>, vector<128x128xf32>
    %cst_8 = arith.constant dense<0.000000e+00> : vector<8x128xf32>
    %12 = tpu.matmul %10, %11, %cst_8 {dimension_numbers = #tpu.dot_dimension_numbers<[1], [0], [0], [1], [0, 0, 1, 1], [], []>} : vector<8x128xf32>, vector<128x128xf32>, vector<8x128xf32> -> vector<8x128xf32>
    %c0_9 = arith.constant 0 : index
    %c0_10 = arith.constant 0 : index
    %13 = vector.load %arg5[%c0_9, %c0_10] : memref<1x128xf32, #tpu.memory_space<vmem>>, vector<1x128xf32>
    %14 = vector.broadcast %13 : vector<1x128xf32> to vector<8x128xf32>
    %15 = arith.addf %12, %14 : vector<8x128xf32>
    %16 = arith.negf %15 : vector<8x128xf32>
    %17 = math.exp %16 : vector<8x128xf32>
    %cst_11 = arith.constant 1.000000e+00 : f32
    %18 = vector.broadcast %cst_11 : f32 to vector<8x128xf32>
    %19 = arith.addf %18, %17 : vector<8x128xf32>
    %20 = arith.divf %18, %19 : vector<8x128xf32>
    %c0_12 = arith.constant 0 : index
    %c0_13 = arith.constant 0 : index
    %21 = vector.load %arg6[%c0_12, %c0_13] : memref<128x128xf32, #tpu.memory_space<vmem>>, vector<128x128xf32>
    %cst_14 = arith.constant dense<0.000000e+00> : vector<8x128xf32>
    %22 = tpu.matmul %20, %21, %cst_14 {dimension_numbers = #tpu.dot_dimension_numbers<[1], [0], [0], [1], [0, 0, 1, 1], [], []>} : vector<8x128xf32>, vector<128x128xf32>, vector<8x128xf32> -> vector<8x128xf32>
    %c0_15 = arith.constant 0 : index
    %c0_16 = arith.constant 0 : index
    %23 = vector.load %arg7[%c0_15, %c0_16] : memref<1x128xf32, #tpu.memory_space<vmem>>, vector<1x128xf32>
    %24 = vector.broadcast %23 : vector<1x128xf32> to vector<8x128xf32>
    %25 = arith.addf %22, %24 : vector<8x128xf32>
    %26 = arith.negf %25 : vector<8x128xf32>
    %27 = math.exp %26 : vector<8x128xf32>
    %cst_17 = arith.constant 1.000000e+00 : f32
    %28 = vector.broadcast %cst_17 : f32 to vector<8x128xf32>
    %29 = arith.addf %28, %27 : vector<8x128xf32>
    %30 = arith.divf %28, %29 : vector<8x128xf32>
    %c0_18 = arith.constant 0 : index
    %c0_19 = arith.constant 0 : index
    %31 = vector.load %arg8[%c0_18, %c0_19] : memref<128x128xf32, #tpu.memory_space<vmem>>, vector<128x128xf32>
    %cst_20 = arith.constant dense<0.000000e+00> : vector<8x128xf32>
    %32 = tpu.matmul %30, %31, %cst_20 {dimension_numbers = #tpu.dot_dimension_numbers<[1], [0], [0], [1], [0, 0, 1, 1], [], []>} : vector<8x128xf32>, vector<128x128xf32>, vector<8x128xf32> -> vector<8x128xf32>
    %c0_21 = arith.constant 0 : index
    %c0_22 = arith.constant 0 : index
    %33 = vector.load %arg9[%c0_21, %c0_22] : memref<1x128xf32, #tpu.memory_space<vmem>>, vector<1x128xf32>
    %34 = vector.broadcast %33 : vector<1x128xf32> to vector<8x128xf32>
    %35 = arith.addf %32, %34 : vector<8x128xf32>
    %c0_23 = arith.constant 0 : index
    %c0_24 = arith.constant 0 : index
    %36 = vector.load %arg10[%c0_23, %c0_24] : memref<8x128xf32, #tpu.memory_space<vmem>>, vector<8x128xf32>
    tpu.vector_store %arg10[%c0_23, %c0_24], %35 {strides = array<i32>} : memref<8x128xf32, #tpu.memory_space<vmem>>, vector<8x128xf32>,
    return
  }
  func.func @transform_0(%arg0: i32) -> (i32, i32) {
    %c0_i32 = arith.constant 0 : i32
    %c0_i32_0 = arith.constant 0 : i32
    return %arg0, %c0_i32 : i32, i32
  }
  func.func @transform_1(%arg0: i32) -> (i32, i32) {
    %c0_i32 = arith.constant 0 : i32
    %c0_i32_0 = arith.constant 0 : i32
    %c0_i32_1 = arith.constant 0 : i32
    return %c0_i32, %c0_i32_0 : i32, i32
  }
  func.func @transform_2(%arg0: i32) -> (i32, i32) {
    %c0_i32 = arith.constant 0 : i32
    %c0_i32_0 = arith.constant 0 : i32
    %c0_i32_1 = arith.constant 0 : i32
    return %c0_i32, %c0_i32_0 : i32, i32
  }
  func.func @transform_3(%arg0: i32) -> (i32, i32) {
    %c0_i32 = arith.constant 0 : i32
    %c0_i32_0 = arith.constant 0 : i32
    %c0_i32_1 = arith.constant 0 : i32
    return %c0_i32, %c0_i32_0 : i32, i32
  }
  func.func @transform_4(%arg0: i32) -> (i32, i32) {
    %c0_i32 = arith.constant 0 : i32
    %c0_i32_0 = arith.constant 0 : i32
    %c0_i32_1 = arith.constant 0 : i32
    return %c0_i32, %c0_i32_0 : i32, i32
  }
  func.func @transform_5(%arg0: i32) -> (i32, i32) {
    %c0_i32 = arith.constant 0 : i32
    %c0_i32_0 = arith.constant 0 : i32
    %c0_i32_1 = arith.constant 0 : i32
    return %c0_i32, %c0_i32_0 : i32, i32
  }
  func.func @transform_6(%arg0: i32) -> (i32, i32) {
    %c0_i32 = arith.constant 0 : i32
    %c0_i32_0 = arith.constant 0 : i32
    %c0_i32_1 = arith.constant 0 : i32
    return %c0_i32, %c0_i32_0 : i32, i32
  }
  func.func @transform_7(%arg0: i32) -> (i32, i32) {
    %c0_i32 = arith.constant 0 : i32
    %c0_i32_0 = arith.constant 0 : i32
    %c0_i32_1 = arith.constant 0 : i32
    return %c0_i32, %c0_i32_0 : i32, i32
  }
  func.func @transform_8(%arg0: i32) -> (i32, i32) {
    %c0_i32 = arith.constant 0 : i32
    %c0_i32_0 = arith.constant 0 : i32
    %c0_i32_1 = arith.constant 0 : i32
    return %c0_i32, %c0_i32_0 : i32, i32
  }
  func.func @transform_9(%arg0: i32) -> (i32, i32) {
    %c0_i32 = arith.constant 0 : i32
    %c0_i32_0 = arith.constant 0 : i32
    return %arg0, %c0_i32 : i32, i32
  }
}

</mosaic_0001>

<llo_original>
// kernel: neural_net_forward.1
$region0: #{neural_net_forward.1}
  #allocation0 [shape = 'u32[]', space=smem, size = 0x4, offset = 0x4, fixed_abs, tag = 'smem constant byte address 0x4 - core index']
  #allocation1 [shape = 'u32[144,128]{1,0:T(1,128)}', space=vmem, size = 0x12000, scoped, tag = 'internal scratch']
  %s0 = inlined_call_operand.vmem [shape: f32[8,128], index: 0, kind: input, shape index: {}]
  %s1 = inlined_call_operand.vmem [shape: f32[128,128], index: 1, kind: input, shape index: {}]
  %s2 = inlined_call_operand.vmem [shape: f32[1,128], index: 2, kind: input, shape index: {}]
  %s3 = inlined_call_operand.vmem [shape: f32[128,128], index: 3, kind: input, shape index: {}]
  %s4 = inlined_call_operand.vmem [shape: f32[1,128], index: 4, kind: input, shape index: {}]
  %s5 = inlined_call_operand.vmem [shape: f32[128,128], index: 5, kind: input, shape index: {}]
  %s6 = inlined_call_operand.vmem [shape: f32[1,128], index: 6, kind: input, shape index: {}]
  %s7 = inlined_call_operand.vmem [shape: f32[128,128], index: 7, kind: input, shape index: {}]
  %s8 = inlined_call_operand.vmem [shape: f32[1,128], index: 8, kind: input, shape index: {}]
  %s9 = inlined_call_operand.vmem [shape: f32[8,128], index: 9, kind: output, shape index: {}]
  %s10 = sld [smem:[#allocation0]]
  $region46: #{neural_net_forward.1} parent=0
    _
  %s12 = ssub.s32 1, %s10
  %s13 = scalar_select 0, %s12, %s10
  // Predicated region
  $region2: #{neural_net_forward.1} parent=0 // pred_check
    _
  $region3: #{neural_net_forward.1} parent=0 // pred_check_branch
    %15 = sbr.rel (0) target = $region5
  $region4: #{neural_net_forward.1} parent=0 // pred_region
    _
  $region5: #{neural_net_forward.1} parent=0 // pred_fallthru
    _
  // Predicated region
  $region6: #{neural_net_forward.1} parent=0 // pred_check
    _
  $region7: #{neural_net_forward.1} parent=0 // pred_check_branch
    %17 = sbr.rel (0) target = $region9
  $region8: #{neural_net_forward.1} parent=0 // pred_region
    _
  $region9: #{neural_net_forward.1} parent=0 // pred_fallthru
    _
  // Predicated region
  $region10: #{neural_net_forward.1} parent=0 // pred_check
    _
  $region11: #{neural_net_forward.1} parent=0 // pred_check_branch
    %19 = sbr.rel (0) target = $region13
  $region12: #{neural_net_forward.1} parent=0 // pred_region
    _
  $region13: #{neural_net_forward.1} parent=0 // pred_fallthru
    _
  // Predicated region
  $region14: #{neural_net_forward.1} parent=0 // pred_check
    _
  $region15: #{neural_net_forward.1} parent=0 // pred_check_branch
    %21 = sbr.rel (0) target = $region17
  $region16: #{neural_net_forward.1} parent=0 // pred_region
    _
  $region17: #{neural_net_forward.1} parent=0 // pred_fallthru
    _
  // Predicated region
  $region18: #{neural_net_forward.1} parent=0 // pred_check
    _
  $region19: #{neural_net_forward.1} parent=0 // pred_check_branch
    %23 = sbr.rel (0) target = $region21
  $region20: #{neural_net_forward.1} parent=0 // pred_region
    _
  $region21: #{neural_net_forward.1} parent=0 // pred_fallthru
    _
  // Predicated region
  $region22: #{neural_net_forward.1} parent=0 // pred_check
    _
  $region23: #{neural_net_forward.1} parent=0 // pred_check_branch
    %25 = sbr.rel (0) target = $region25
  $region24: #{neural_net_forward.1} parent=0 // pred_region
    _
  $region25: #{neural_net_forward.1} parent=0 // pred_fallthru
    _
  // Predicated region
  $region26: #{neural_net_forward.1} parent=0 // pred_check
    _
  $region27: #{neural_net_forward.1} parent=0 // pred_check_branch
    %27 = sbr.rel (0) target = $region29
  $region28: #{neural_net_forward.1} parent=0 // pred_region
    _
  $region29: #{neural_net_forward.1} parent=0 // pred_fallthru
    _
  // Predicated region
  $region30: #{neural_net_forward.1} parent=0 // pred_check
    _
  $region31: #{neural_net_forward.1} parent=0 // pred_check_branch
    %29 = sbr.rel (0) target = $region33
  $region32: #{neural_net_forward.1} parent=0 // pred_region
    _
  $region33: #{neural_net_forward.1} parent=0 // pred_fallthru
    _
  // Predicated region
  $region34: #{neural_net_forward.1} parent=0 // pred_check
    _
  $region35: #{neural_net_forward.1} parent=0 // pred_check_branch
    %31 = sbr.rel (0) target = $region37
  $region36: #{neural_net_forward.1} parent=0 // pred_region
    _
  $region37: #{neural_net_forward.1} parent=0 // pred_fallthru
    _
  %v32 = vld [vmem:[%s0] sm:$0xff]
  %v33 = vld [vmem:[%s1] sm:$0xff]
  %v34 = vld [vmem:[%s1 + $0x8] sm:$0xff]
  %v35 = vld [vmem:[%s1 + $0x10] sm:$0xff]
  %v36 = vld [vmem:[%s1 + $0x18] sm:$0xff]
  %v37 = vld [vmem:[%s1 + $0x20] sm:$0xff]
  %v38 = vld [vmem:[%s1 + $0x28] sm:$0xff]
  %v39 = vld [vmem:[%s1 + $0x30] sm:$0xff]
  %v40 = vld [vmem:[%s1 + $0x38] sm:$0xff]
  %v41 = vld [vmem:[%s1 + $0x40] sm:$0xff]
  %v42 = vld [vmem:[%s1 + $0x48] sm:$0xff]
  %v43 = vld [vmem:[%s1 + $0x50] sm:$0xff]
  %v44 = vld [vmem:[%s1 + $0x58] sm:$0xff]
  %v45 = vld [vmem:[%s1 + $0x60] sm:$0xff]
  %v46 = vld [vmem:[%s1 + $0x68] sm:$0xff]
  %v47 = vld [vmem:[%s1 + $0x70] sm:$0xff]
  %v48 = vld [vmem:[%s1 + $0x78] sm:$0xff]
  %v49 = vld [vmem:[%s2] sm:$0x1]
  %v51 = vlaneseq
  %v52 = vshrl.u32 %v51, 7
  %v53 = vsub.s32 0, %v52
  %v54 = vrot.slane %v49, %v53
  %56 = vmatprep.subr.mxu0 0.0
  %57 = vmatpush1.msra.mxu0 %v33
  %58 = vmatprep.subr.mxu0 0.0
  %59 = vmatpush1.msra.mxu0 %v34
  %60 = vmatprep.subr.mxu0 0.0
  %61 = vmatpush1.msra.mxu0 %v35
  %62 = vmatprep.subr.mxu0 0.0
  %63 = vmatpush1.msra.mxu0 %v36
  %64 = vmatprep.subr.mxu0 0.0
  %65 = vmatpush1.msra.mxu0 %v37
  %66 = vmatprep.subr.mxu0 0.0
  %67 = vmatpush1.msra.mxu0 %v38
  %68 = vmatprep.subr.mxu0 0.0
  %69 = vmatpush1.msra.mxu0 %v39
  %70 = vmatprep.subr.mxu0 0.0
  %71 = vmatpush1.msra.mxu0 %v40
  %72 = vmatprep.subr.mxu0 0.0
  %73 = vmatpush1.msra.mxu0 %v41
  %74 = vmatprep.subr.mxu0 0.0
  %75 = vmatpush1.msra.mxu0 %v42
  %76 = vmatprep.subr.mxu0 0.0
  %77 = vmatpush1.msra.mxu0 %v43
  %78 = vmatprep.subr.mxu0 0.0
  %79 = vmatpush1.msra.mxu0 %v44
  %80 = vmatprep.subr.mxu0 0.0
  %81 = vmatpush1.msra.mxu0 %v45
  %82 = vmatprep.subr.mxu0 0.0
  %83 = vmatpush1.msra.mxu0 %v46
  %84 = vmatprep.subr.mxu0 0.0
  %85 = vmatpush1.msra.mxu0 %v47
  %86 = vmatprep.subr.mxu0 0.0
  %87 = vmatpush1.msra.mxu0 %v48
  %88 = vmatprep.subr.mxu0 0.0
  %89 = vmatpush1.msra.mxu0 0.0
  %90 = vmatprep.subr.mxu0 0.0
  %91 = vmatpush1.msra.mxu0 0.0
  %92 = vmatprep.subr.mxu0 0.0
  %93 = vmatpush1.msra.mxu0 0.0
  %94 = vmatprep.subr.mxu0 0.0
  %95 = vmatpush1.msra.mxu0 0.0
  %96 = vmatprep.subr.mxu0 0.0
  %97 = vmatpush1.msra.mxu0 0.0
  %98 = vmatprep.subr.mxu0 0.0
  %99 = vmatpush1.msra.mxu0 0.0
  %100 = vmatprep.subr.mxu0 0.0
  %101 = vmatpush1.msra.mxu0 0.0
  %102 = vmatprep.subr.mxu0 0.0
  %103 = vmatpush1.msra.mxu0 0.0
  %104 = vmatprep.subr.mxu0 0.0
  %105 = vmatpush1.msra.mxu0 0.0
  %106 = vmatprep.subr.mxu0 0.0
  %107 = vmatpush1.msra.mxu0 0.0
  %108 = vmatprep.subr.mxu0 0.0
  %109 = vmatpush1.msra.mxu0 0.0
  %110 = vmatprep.subr.mxu0 0.0
  %111 = vmatpush1.msra.mxu0 0.0
  %112 = vmatprep.subr.mxu0 0.0
  %113 = vmatpush1.msra.mxu0 0.0
  %114 = vmatprep.subr.mxu0 0.0
  %115 = vmatpush1.msra.mxu0 0.0
  %116 = vmatprep.subr.mxu0 0.0
  %117 = vmatpush1.msra.mxu0 0.0
  %118 = vmatprep.subr.mxu0 0.0
  %119 = vmatpush1.msra.mxu0 0.0
  %120 = vmatprep.mubr.f32.mxu0 0.0
  %121 = vmatmul.mubr.f32.gmra.mrb[0].mxu0 %v32
  %v122 = vpop.f32.mrb[0].mxu0
  %v123 = vadd.f32 %v54, %v122
  %v124 = vpop.f32.mrb[0].mxu0
  %125 = vdwg.mxu0
  %v126 = vxor.u32 %v123, 2147483648
  %v127 = vmul.f32 %v126, 1.442695
  %v128 = vpow.pop %v127
  %v129 = vadd.f32 %v128, 1.0
  %v130 = vrcp.pop %v129
  %v131 = vmul.f32 1.0, %v130
  %v132 = vld [vmem:[%s3] sm:$0xff]
  %v133 = vld [vmem:[%s3 + $0x8] sm:$0xff]
  %v134 = vld [vmem:[%s3 + $0x10] sm:$0xff]
  %v135 = vld [vmem:[%s3 + $0x18] sm:$0xff]
  %v136 = vld [vmem:[%s3 + $0x20] sm:$0xff]
  %v137 = vld [vmem:[%s3 + $0x28] sm:$0xff]
  %v138 = vld [vmem:[%s3 + $0x30] sm:$0xff]
  %v139 = vld [vmem:[%s3 + $0x38] sm:$0xff]
  %v140 = vld [vmem:[%s3 + $0x40] sm:$0xff]
  %v141 = vld [vmem:[%s3 + $0x48] sm:$0xff]
  %v142 = vld [vmem:[%s3 + $0x50] sm:$0xff]
  %v143 = vld [vmem:[%s3 + $0x58] sm:$0xff]
  %v144 = vld [vmem:[%s3 + $0x60] sm:$0xff]
  %v145 = vld [vmem:[%s3 + $0x68] sm:$0xff]
  %v146 = vld [vmem:[%s3 + $0x70] sm:$0xff]
  %v147 = vld [vmem:[%s3 + $0x78] sm:$0xff]
  %v148 = vld [vmem:[%s4] sm:$0x1]
  %v150 = vlaneseq
  %v151 = vshrl.u32 %v150, 7
  %v152 = vsub.s32 0, %v151
  %v153 = vrot.slane %v148, %v152
  %155 = vmatprep.subr.mxu0 0.0
  %156 = vmatpush1.msra.mxu0 %v132
  %157 = vmatprep.subr.mxu0 0.0
  %158 = vmatpush1.msra.mxu0 %v133
  %159 = vmatprep.subr.mxu0 0.0
  %160 = vmatpush1.msra.mxu0 %v134
  %161 = vmatprep.subr.mxu0 0.0
  %162 = vmatpush1.msra.mxu0 %v135
  %163 = vmatprep.subr.mxu0 0.0
  %164 = vmatpush1.msra.mxu0 %v136
  %165 = vmatprep.subr.mxu0 0.0
  %166 = vmatpush1.msra.mxu0 %v137
  %167 = vmatprep.subr.mxu0 0.0
  %168 = vmatpush1.msra.mxu0 %v138
  %169 = vmatprep.subr.mxu0 0.0
  %170 = vmatpush1.msra.mxu0 %v139
  %171 = vmatprep.subr.mxu0 0.0
  %172 = vmatpush1.msra.mxu0 %v140
  %173 = vmatprep.subr.mxu0 0.0
  %174 = vmatpush1.msra.mxu0 %v141
  %175 = vmatprep.subr.mxu0 0.0
  %176 = vmatpush1.msra.mxu0 %v142
  %177 = vmatprep.subr.mxu0 0.0
  %178 = vmatpush1.msra.mxu0 %v143
  %179 = vmatprep.subr.mxu0 0.0
  %180 = vmatpush1.msra.mxu0 %v144
  %181 = vmatprep.subr.mxu0 0.0
  %182 = vmatpush1.msra.mxu0 %v145
  %183 = vmatprep.subr.mxu0 0.0
  %184 = vmatpush1.msra.mxu0 %v146
  %185 = vmatprep.subr.mxu0 0.0
  %186 = vmatpush1.msra.mxu0 %v147
  %187 = vmatprep.subr.mxu0 0.0
  %188 = vmatpush1.msra.mxu0 0.0
  %189 = vmatprep.subr.mxu0 0.0
  %190 = vmatpush1.msra.mxu0 0.0
  %191 = vmatprep.subr.mxu0 0.0
  %192 = vmatpush1.msra.mxu0 0.0
  %193 = vmatprep.subr.mxu0 0.0
  %194 = vmatpush1.msra.mxu0 0.0
  %195 = vmatprep.subr.mxu0 0.0
  %196 = vmatpush1.msra.mxu0 0.0
  %197 = vmatprep.subr.mxu0 0.0
  %198 = vmatpush1.msra.mxu0 0.0
  %199 = vmatprep.subr.mxu0 0.0
  %200 = vmatpush1.msra.mxu0 0.0
  %201 = vmatprep.subr.mxu0 0.0
  %202 = vmatpush1.msra.mxu0 0.0
  %203 = vmatprep.subr.mxu0 0.0
  %204 = vmatpush1.msra.mxu0 0.0
  %205 = vmatprep.subr.mxu0 0.0
  %206 = vmatpush1.msra.mxu0 0.0
  %207 = vmatprep.subr.mxu0 0.0
  %208 = vmatpush1.msra.mxu0 0.0
  %209 = vmatprep.subr.mxu0 0.0
  %210 = vmatpush1.msra.mxu0 0.0
  %211 = vmatprep.subr.mxu0 0.0
  %212 = vmatpush1.msra.mxu0 0.0
  %213 = vmatprep.subr.mxu0 0.0
  %214 = vmatpush1.msra.mxu0 0.0
  %215 = vmatprep.subr.mxu0 0.0
  %216 = vmatpush1.msra.mxu0 0.0
  %217 = vmatprep.subr.mxu0 0.0
  %218 = vmatpush1.msra.mxu0 0.0
  %219 = vmatprep.mubr.f32.mxu0 0.0
  %220 = vmatmul.mubr.f32.gmra.mrb[0].mxu0 %v131
  %v221 = vpop.f32.mrb[0].mxu0
  %v222 = vadd.f32 %v153, %v221
  %v223 = vpop.f32.mrb[0].mxu0
  %224 = vdwg.mxu0
  %v225 = vxor.u32 %v222, 2147483648
  %v226 = vmul.f32 %v225, 1.442695
  %v227 = vpow.pop %v226
  %v228 = vadd.f32 %v227, 1.0
  %v229 = vrcp.pop %v228
  %v230 = vmul.f32 1.0, %v229
  %v231 = vld [vmem:[%s5] sm:$0xff]
  %v232 = vld [vmem:[%s5 + $0x8] sm:$0xff]
  %v233 = vld [vmem:[%s5 + $0x10] sm:$0xff]
  %v234 = vld [vmem:[%s5 + $0x18] sm:$0xff]
  %v235 = vld [vmem:[%s5 + $0x20] sm:$0xff]
  %v236 = vld [vmem:[%s5 + $0x28] sm:$0xff]
  %v237 = vld [vmem:[%s5 + $0x30] sm:$0xff]
  %v238 = vld [vmem:[%s5 + $0x38] sm:$0xff]
  %v239 = vld [vmem:[%s5 + $0x40] sm:$0xff]
  %v240 = vld [vmem:[%s5 + $0x48] sm:$0xff]
  %v241 = vld [vmem:[%s5 + $0x50] sm:$0xff]
  %v242 = vld [vmem:[%s5 + $0x58] sm:$0xff]
  %v243 = vld [vmem:[%s5 + $0x60] sm:$0xff]
  %v244 = vld [vmem:[%s5 + $0x68] sm:$0xff]
  %v245 = vld [vmem:[%s5 + $0x70] sm:$0xff]
  %v246 = vld [vmem:[%s5 + $0x78] sm:$0xff]
  %v247 = vld [vmem:[%s6] sm:$0x1]
  %v249 = vlaneseq
  %v250 = vshrl.u32 %v249, 7
  %v251 = vsub.s32 0, %v250
  %v252 = vrot.slane %v247, %v251
  %254 = vmatprep.subr.mxu0 0.0
  %255 = vmatpush1.msra.mxu0 %v231
  %256 = vmatprep.subr.mxu0 0.0
  %257 = vmatpush1.msra.mxu0 %v232
  %258 = vmatprep.subr.mxu0 0.0
  %259 = vmatpush1.msra.mxu0 %v233
  %260 = vmatprep.subr.mxu0 0.0
  %261 = vmatpush1.msra.mxu0 %v234
  %262 = vmatprep.subr.mxu0 0.0
  %263 = vmatpush1.msra.mxu0 %v235
  %264 = vmatprep.subr.mxu0 0.0
  %265 = vmatpush1.msra.mxu0 %v236
  %266 = vmatprep.subr.mxu0 0.0
  %267 = vmatpush1.msra.mxu0 %v237
  %268 = vmatprep.subr.mxu0 0.0
  %269 = vmatpush1.msra.mxu0 %v238
  %270 = vmatprep.subr.mxu0 0.0
  %271 = vmatpush1.msra.mxu0 %v239
  %272 = vmatprep.subr.mxu0 0.0
  %273 = vmatpush1.msra.mxu0 %v240
  %274 = vmatprep.subr.mxu0 0.0
  %275 = vmatpush1.msra.mxu0 %v241
  %276 = vmatprep.subr.mxu0 0.0
  %277 = vmatpush1.msra.mxu0 %v242
  %278 = vmatprep.subr.mxu0 0.0
  %279 = vmatpush1.msra.mxu0 %v243
  %280 = vmatprep.subr.mxu0 0.0
  %281 = vmatpush1.msra.mxu0 %v244
  %282 = vmatprep.subr.mxu0 0.0
  %283 = vmatpush1.msra.mxu0 %v245
  %284 = vmatprep.subr.mxu0 0.0
  %285 = vmatpush1.msra.mxu0 %v246
  %286 = vmatprep.subr.mxu0 0.0
  %287 = vmatpush1.msra.mxu0 0.0
  %288 = vmatprep.subr.mxu0 0.0
  %289 = vmatpush1.msra.mxu0 0.0
  %290 = vmatprep.subr.mxu0 0.0
  %291 = vmatpush1.msra.mxu0 0.0
  %292 = vmatprep.subr.mxu0 0.0
  %293 = vmatpush1.msra.mxu0 0.0
  %294 = vmatprep.subr.mxu0 0.0
  %295 = vmatpush1.msra.mxu0 0.0
  %296 = vmatprep.subr.mxu0 0.0
  %297 = vmatpush1.msra.mxu0 0.0
  %298 = vmatprep.subr.mxu0 0.0
  %299 = vmatpush1.msra.mxu0 0.0
  %300 = vmatprep.subr.mxu0 0.0
  %301 = vmatpush1.msra.mxu0 0.0
  %302 = vmatprep.subr.mxu0 0.0
  %303 = vmatpush1.msra.mxu0 0.0
  %304 = vmatprep.subr.mxu0 0.0
  %305 = vmatpush1.msra.mxu0 0.0
  %306 = vmatprep.subr.mxu0 0.0
  %307 = vmatpush1.msra.mxu0 0.0
  %308 = vmatprep.subr.mxu0 0.0
  %309 = vmatpush1.msra.mxu0 0.0
  %310 = vmatprep.subr.mxu0 0.0
  %311 = vmatpush1.msra.mxu0 0.0
  %312 = vmatprep.subr.mxu0 0.0
  %313 = vmatpush1.msra.mxu0 0.0
  %314 = vmatprep.subr.mxu0 0.0
  %315 = vmatpush1.msra.mxu0 0.0
  %316 = vmatprep.subr.mxu0 0.0
  %317 = vmatpush1.msra.mxu0 0.0
  %318 = vmatprep.mubr.f32.mxu0 0.0
  %319 = vmatmul.mubr.f32.gmra.mrb[0].mxu0 %v230
  %v320 = vpop.f32.mrb[0].mxu0
  %v321 = vadd.f32 %v252, %v320
  %v322 = vpop.f32.mrb[0].mxu0
  %323 = vdwg.mxu0
  %v324 = vxor.u32 %v321, 2147483648
  %v325 = vmul.f32 %v324, 1.442695
  %v326 = vpow.pop %v325
  %v327 = vadd.f32 %v326, 1.0
  %v328 = vrcp.pop %v327
  %v329 = vmul.f32 1.0, %v328
  %v330 = vld [vmem:[%s7] sm:$0xff]
  %v331 = vld [vmem:[%s7 + $0x8] sm:$0xff]
  %v332 = vld [vmem:[%s7 + $0x10] sm:$0xff]
  %v333 = vld [vmem:[%s7 + $0x18] sm:$0xff]
  %v334 = vld [vmem:[%s7 + $0x20] sm:$0xff]
  %v335 = vld [vmem:[%s7 + $0x28] sm:$0xff]
  %v336 = vld [vmem:[%s7 + $0x30] sm:$0xff]
  %v337 = vld [vmem:[%s7 + $0x38] sm:$0xff]
  %v338 = vld [vmem:[%s7 + $0x40] sm:$0xff]
  %v339 = vld [vmem:[%s7 + $0x48] sm:$0xff]
  %v340 = vld [vmem:[%s7 + $0x50] sm:$0xff]
  %v341 = vld [vmem:[%s7 + $0x58] sm:$0xff]
  %v342 = vld [vmem:[%s7 + $0x60] sm:$0xff]
  %v343 = vld [vmem:[%s7 + $0x68] sm:$0xff]
  %v344 = vld [vmem:[%s7 + $0x70] sm:$0xff]
  %v345 = vld [vmem:[%s7 + $0x78] sm:$0xff]
  %v346 = vld [vmem:[%s8] sm:$0x1]
  %v348 = vlaneseq
  %v349 = vshrl.u32 %v348, 7
  %v350 = vsub.s32 0, %v349
  %v351 = vrot.slane %v346, %v350
  %353 = vmatprep.subr.mxu0 0.0
  %354 = vmatpush1.msra.mxu0 %v330
  %355 = vmatprep.subr.mxu0 0.0
  %356 = vmatpush1.msra.mxu0 %v331
  %357 = vmatprep.subr.mxu0 0.0
  %358 = vmatpush1.msra.mxu0 %v332
  %359 = vmatprep.subr.mxu0 0.0
  %360 = vmatpush1.msra.mxu0 %v333
  %361 = vmatprep.subr.mxu0 0.0
  %362 = vmatpush1.msra.mxu0 %v334
  %363 = vmatprep.subr.mxu0 0.0
  %364 = vmatpush1.msra.mxu0 %v335
  %365 = vmatprep.subr.mxu0 0.0
  %366 = vmatpush1.msra.mxu0 %v336
  %367 = vmatprep.subr.mxu0 0.0
  %368 = vmatpush1.msra.mxu0 %v337
  %369 = vmatprep.subr.mxu0 0.0
  %370 = vmatpush1.msra.mxu0 %v338
  %371 = vmatprep.subr.mxu0 0.0
  %372 = vmatpush1.msra.mxu0 %v339
  %373 = vmatprep.subr.mxu0 0.0
  %374 = vmatpush1.msra.mxu0 %v340
  %375 = vmatprep.subr.mxu0 0.0
  %376 = vmatpush1.msra.mxu0 %v341
  %377 = vmatprep.subr.mxu0 0.0
  %378 = vmatpush1.msra.mxu0 %v342
  %379 = vmatprep.subr.mxu0 0.0
  %380 = vmatpush1.msra.mxu0 %v343
  %381 = vmatprep.subr.mxu0 0.0
  %382 = vmatpush1.msra.mxu0 %v344
  %383 = vmatprep.subr.mxu0 0.0
  %384 = vmatpush1.msra.mxu0 %v345
  %385 = vmatprep.subr.mxu0 0.0
  %386 = vmatpush1.msra.mxu0 0.0
  %387 = vmatprep.subr.mxu0 0.0
  %388 = vmatpush1.msra.mxu0 0.0
  %389 = vmatprep.subr.mxu0 0.0
  %390 = vmatpush1.msra.mxu0 0.0
  %391 = vmatprep.subr.mxu0 0.0
  %392 = vmatpush1.msra.mxu0 0.0
  %393 = vmatprep.subr.mxu0 0.0
  %394 = vmatpush1.msra.mxu0 0.0
  %395 = vmatprep.subr.mxu0 0.0
  %396 = vmatpush1.msra.mxu0 0.0
  %397 = vmatprep.subr.mxu0 0.0
  %398 = vmatpush1.msra.mxu0 0.0
  %399 = vmatprep.subr.mxu0 0.0
  %400 = vmatpush1.msra.mxu0 0.0
  %401 = vmatprep.subr.mxu0 0.0
  %402 = vmatpush1.msra.mxu0 0.0
  %403 = vmatprep.subr.mxu0 0.0
  %404 = vmatpush1.msra.mxu0 0.0
  %405 = vmatprep.subr.mxu0 0.0
  %406 = vmatpush1.msra.mxu0 0.0
  %407 = vmatprep.subr.mxu0 0.0
  %408 = vmatpush1.msra.mxu0 0.0
  %409 = vmatprep.subr.mxu0 0.0
  %410 = vmatpush1.msra.mxu0 0.0
  %411 = vmatprep.subr.mxu0 0.0
  %412 = vmatpush1.msra.mxu0 0.0
  %413 = vmatprep.subr.mxu0 0.0
  %414 = vmatpush1.msra.mxu0 0.0
  %415 = vmatprep.subr.mxu0 0.0
  %416 = vmatpush1.msra.mxu0 0.0
  %417 = vmatprep.mubr.f32.mxu0 0.0
  %418 = vmatmul.mubr.f32.gmra.mrb[0].mxu0 %v329
  %v419 = vpop.f32.mrb[0].mxu0
  %v420 = vadd.f32 %v351, %v419
  %v421 = vpop.f32.mrb[0].mxu0
  %422 = vdwg.mxu0
  %423 = vst [vmem:[%s9] sm:$0xff] %v420
  // Predicated region
  $region38: #{neural_net_forward.1} parent=0 // pred_check
    _
  $region39: #{neural_net_forward.1} parent=0 // pred_check_branch
    %425 = sbr.rel (0) target = $region41
  $region40: #{neural_net_forward.1} parent=0 // pred_region
    _
  $region41: #{neural_net_forward.1} parent=0 // pred_fallthru
    _
  // Predicated region
  $region42: #{neural_net_forward.1} parent=0 // pred_check
    _
  $region43: #{neural_net_forward.1} parent=0 // pred_check_branch
    %427 = sbr.rel (0) target = $region45
  $region44: #{neural_net_forward.1} parent=0 // pred_region
    _
  $region45: #{neural_net_forward.1} parent=0 // pred_fallthru
    _

</llo_original>
